<compile_context>
chip_gen: v6e
topology: v6e:2x2x1
jax: 0.10.0
libtpu: 0.0.40
codegen_flags: <defaults>
</compile_context>

<pallas_src>
import functools

import jax
import jax.numpy as jnp
from jax.experimental import pallas as pl
from jax.experimental.pallas import tpu as pltpu


def _channel_attention_kernel(x_ref, w1_ref, w2_ref, bias_ref, out_ref, h1_ref,
                              *, channel_tile, num_channel_tiles):
    # x_ref:    (TC, HW)  one channel-tile of one batch element (batch squeezed)
    # w1_ref:   (HW, F)   fc1.weight.T   (VMEM-resident, constant index map)
    # w2_ref:   (1, F)    fc2.weight     (resident)
    # bias_ref: (C, 1)    per-channel bias (resident)
    # out_ref:  (C, 1)    softmax attention weights for this batch element
    # h1_ref:   (C, F)    VMEM scratch collecting relu(fc1(x)) per channel
    j = pl.program_id(1)

    x = x_ref[...].astype(jnp.float32)                                   # (TC, HW)
    h1 = jnp.dot(x, w1_ref[...], preferred_element_type=jnp.float32)     # (TC, F)
    h1 = jnp.maximum(h1, 0.0)

    if num_channel_tiles == 1:
        h1_ref[...] = h1
    else:
        start = pl.multiple_of(j * channel_tile, channel_tile)
        h1_ref[pl.ds(start, channel_tile), :] = h1

    @pl.when(j == num_channel_tiles - 1)
    def _epilogue():
        feats = h1_ref[...]                                              # (C, F)
        # fc2 has out_features == 1: use a lane-reduce instead of a degenerate
        # N=1 matmul.
        logits = jnp.sum(feats * w2_ref[...], axis=1, keepdims=True)     # (C, 1)
        logits = logits + bias_ref[...]
        m = jnp.max(logits, axis=0, keepdims=True)
        e = jnp.exp(logits - m)
        denom = jnp.sum(e, axis=0, keepdims=True)
        # Exact divide: softmax is over only C values once per batch element,
        # so an approx EUP reciprocal would only cost accuracy here.
        out_ref[...] = (e / denom).astype(out_ref.dtype)


def _pick_channel_tile(c, hw, itemsize, budget_bytes=16 * 1024 * 1024):
    """Largest channel tile whose double-buffered x block fits the budget."""
    per_channel = 2 * hw * itemsize          # BlockSpec double-buffers inputs
    max_tc = max(1, budget_bytes // per_channel)
    if c <= max_tc:
        return c                             # whole channel dim in one block
    # Largest multiple-of-8 divisor of c that fits (keeps the (8,128) sublane
    # rule and avoids a ragged last tile).
    upper = (min(c, max_tc) // 8) * 8
    for tc in range(upper, 0, -8):
        if c % tc == 0:
            return tc
    # TODO(synk): channel counts with no suitable divisor need a masked ragged
    # last tile; fall back to a single full-C block (may exceed the budget).
    return c


def channel_attention_forward(x_nchw, fc1_weight, fc2_weight, bias):
    """Forward pass of channel_attention.

    x_nchw:     (b, c, h, w)  float32 or bfloat16
    fc1_weight: (F, h*w)      PyTorch layout, no bias
    fc2_weight: (1, F)        PyTorch layout, no bias
    bias:       (c,)          per-channel bias added before the softmax
    returns     (b, c)        softmax over channels
    """
    b, c, h, w = x_nchw.shape
    hw = h * w
    f = fc1_weight.shape[0]
    assert fc1_weight.shape == (f, hw)
    assert fc2_weight.shape == (1, f)
    assert bias.shape == (c,)

    x = x_nchw.reshape(b, c, hw)
    w1_t = fc1_weight.T.astype(jnp.float32)          # (HW, F)
    w2 = fc2_weight.astype(jnp.float32)              # (1, F)
    bias_col = bias.reshape(c, 1).astype(jnp.float32)

    tc = _pick_channel_tile(c, hw, x.dtype.itemsize)
    n_ct = c // tc

    kernel = functools.partial(_channel_attention_kernel,
                               channel_tile=tc, num_channel_tiles=n_ct)

    out = pl.pallas_call(
        kernel,
        out_shape=jax.ShapeDtypeStruct((b, c, 1), jnp.float32),
        grid=(b, n_ct),
        in_specs=[
            pl.BlockSpec((None, tc, hw), lambda i, j: (i, j, 0)),  # x: pipelined
            pl.BlockSpec((hw, f), lambda i, j: (0, 0)),            # w1: resident
            pl.BlockSpec((1, f), lambda i, j: (0, 0)),             # w2: resident
            pl.BlockSpec((c, 1), lambda i, j: (0, 0)),             # bias: resident
        ],
        out_specs=pl.BlockSpec((None, c, 1), lambda i, j: (i, 0, 0)),
        scratch_shapes=[pltpu.VMEM((c, f), jnp.float32)],
        compiler_params=pltpu.CompilerParams(
            dimension_semantics=("parallel", "arbitrary"),
            vmem_limit_bytes=32 * 1024 * 1024,
        ),
    )(x, w1_t, w2, bias_col)

    return out.reshape(b, c)


def _reference(x_nchw, fc1_weight, fc2_weight, bias):
    b, c, h, w = x_nchw.shape
    hw = h * w
    xr = x_nchw.reshape(b, c, hw).astype(jnp.float32)
    h1 = jnp.maximum(jnp.einsum("bck,fk->bcf", xr, fc1_weight), 0.0)
    logits = jnp.einsum("bcf,of->bco", h1, fc2_weight)[..., 0] + bias[None, :]
    return jax.nn.softmax(logits, axis=1)


if __name__ == "__main__":
    # Small shapes consistent with the module: feature_size = h = w.
    B, C, H, W = 2, 4, 16, 16
    F = H                       # fc1: (h*w -> F), fc2: (F -> 1)
    HW = H * W

    key = jax.random.PRNGKey(0)
    kx, k1, k2, kb = jax.random.split(key, 4)

    x = jax.random.normal(kx, (B, C, H, W), dtype=jnp.float32)

    bound1 = 1.0 / jnp.sqrt(float(HW))
    bound2 = 1.0 / jnp.sqrt(float(F))
    fc1_weight = jax.random.uniform(k1, (F, HW), jnp.float32,
                                    minval=-bound1, maxval=bound1)
    fc2_weight = jax.random.uniform(k2, (1, F), jnp.float32,
                                    minval=-bound2, maxval=bound2)
    # The module initialises the bias parameter to zeros; use random values
    # here so the bias-add path is actually exercised.
    bias = jax.random.uniform(kb, (C,), jnp.float32, minval=-0.5, maxval=0.5)

    out = jax.block_until_ready(
        channel_attention_forward(x, fc1_weight, fc2_weight, bias))
    ref = _reference(x, fc1_weight, fc2_weight, bias)
    assert out.shape == (B, C)
    assert jnp.allclose(out, ref, atol=1e-4, rtol=1e-4), \
        float(jnp.max(jnp.abs(out - ref)))
    assert jnp.allclose(jnp.sum(out, axis=-1), 1.0, atol=1e-5)

    # bf16 activations: halves x HBM traffic (x dominates the byte count);
    # accumulation stays f32 inside the kernel.
    x_bf16 = x.astype(jnp.bfloat16)
    out_bf16 = jax.block_until_ready(
        channel_attention_forward(x_bf16, fc1_weight, fc2_weight, bias))
    ref_bf16 = _reference(x_bf16, fc1_weight, fc2_weight, bias)
    assert jnp.allclose(out_bf16, ref_bf16, atol=1e-4, rtol=1e-4), \
        float(jnp.max(jnp.abs(out_bf16 - ref_bf16)))

    print("KERNEL_OK")
</pallas_src>

<mosaic_0001>
module attributes {stable_mosaic.version = 11 : i64} {
  func.func @_channel_attention_kernel(%arg0: i32, %arg1: i32, %arg2: memref<1x4x256xf32, #tpu.memory_space<vmem>>, %arg3: memref<256x16xf32, #tpu.memory_space<vmem>>, %arg4: memref<1x16xf32, #tpu.memory_space<vmem>>, %arg5: memref<4x1xf32, #tpu.memory_space<vmem>>, %arg6: memref<1x4x1xf32, #tpu.memory_space<vmem>>, %arg7: memref<4x16xf32, #tpu.memory_space<vmem>>) attributes {dimension_semantics = [#tpu.dimension_semantics<parallel>, #tpu.dimension_semantics<arbitrary>], iteration_bounds = array<i64: 2, 1>, scalar_prefetch = 0 : i64, scratch_operands = 1 : i64, tpu.core_type = #tpu.core_type<tc>, window_params = [{transform_indices = @transform_0, window_bounds = array<i64: 1, 4, 256>}, {pipeline_mode = #tpu.pipeline_mode<synchronous>, transform_indices = @transform_1, window_bounds = array<i64: 256, 16>}, {pipeline_mode = #tpu.pipeline_mode<synchronous>, transform_indices = @transform_2, window_bounds = array<i64: 1, 16>}, {pipeline_mode = #tpu.pipeline_mode<synchronous>, transform_indices = @transform_3, window_bounds = array<i64: 4, 1>}, {transform_indices = @transform_4, window_bounds = array<i64: 1, 4, 1>}]} {
    %c0 = arith.constant 0 : index
    %c0_0 = arith.constant 0 : index
    %c0_1 = arith.constant 0 : index
    %0 = vector.load %arg2[%c0, %c0_0, %c0_1] : memref<1x4x256xf32, #tpu.memory_space<vmem>>, vector<1x4x256xf32>
    %1 = vector.shape_cast %0 : vector<1x4x256xf32> to vector<4x256xf32>
    %c0_2 = arith.constant 0 : index
    %c0_3 = arith.constant 0 : index
    %2 = vector.load %arg3[%c0_2, %c0_3] : memref<256x16xf32, #tpu.memory_space<vmem>>, vector<256x16xf32>
    %cst = arith.constant dense<0.000000e+00> : vector<4x16xf32>
    %3 = tpu.matmul %1, %2, %cst {dimension_numbers = #tpu.dot_dimension_numbers<[1], [0], [0], [1], [0, 0, 1, 1], [], []>} : vector<4x256xf32>, vector<256x16xf32>, vector<4x16xf32> -> vector<4x16xf32>
    %cst_4 = arith.constant 0.000000e+00 : f32
    %4 = vector.broadcast %cst_4 : f32 to vector<4x16xf32>
    %5 = arith.maximumf %3, %4 : vector<4x16xf32>
    %c0_5 = arith.constant 0 : index
    %c0_6 = arith.constant 0 : index
    %6 = vector.load %arg7[%c0_5, %c0_6] : memref<4x16xf32, #tpu.memory_space<vmem>>, vector<4x16xf32>
    tpu.vector_store %arg7[%c0_5, %c0_6], %5 {strides = array<i32>} : memref<4x16xf32, #tpu.memory_space<vmem>>, vector<4x16xf32>,
    %c0_i32 = arith.constant 0 : i32
    %7 = arith.cmpi eq, %arg1, %c0_i32 : i32
    %8 = arith.extui %7 : i1 to i32
    %c0_i32_7 = arith.constant 0 : i32
    %9 = arith.cmpi ne, %8, %c0_i32_7 : i32
    scf.if %9 {
      %c0_8 = arith.constant 0 : index
      %c0_9 = arith.constant 0 : index
      %10 = vector.load %arg7[%c0_8, %c0_9] : memref<4x16xf32, #tpu.memory_space<vmem>>, vector<4x16xf32>
      %c0_10 = arith.constant 0 : index
      %c0_11 = arith.constant 0 : index
      %11 = vector.load %arg4[%c0_10, %c0_11] : memref<1x16xf32, #tpu.memory_space<vmem>>, vector<1x16xf32>
      %12 = vector.broadcast %11 : vector<1x16xf32> to vector<4x16xf32>
      %13 = arith.mulf %10, %12 : vector<4x16xf32>
      %cst_12 = arith.constant dense<0.000000e+00> : vector<4xf32>
      %14 = vector.multi_reduction <add>, %13, %cst_12 [1] : vector<4x16xf32> to vector<4xf32>
      %15 = vector.shape_cast %14 : vector<4xf32> to vector<4x1xf32>
      %c0_13 = arith.constant 0 : index
      %c0_14 = arith.constant 0 : index
      %16 = vector.load %arg5[%c0_13, %c0_14] : memref<4x1xf32, #tpu.memory_space<vmem>>, vector<4x1xf32>
      %17 = arith.addf %15, %16 : vector<4x1xf32>
      %cst_15 = arith.constant dense<0xFF800000> : vector<1xf32>
      %18 = vector.multi_reduction <maximumf>, %17, %cst_15 [0] : vector<4x1xf32> to vector<1xf32>
      %19 = vector.shape_cast %18 : vector<1xf32> to vector<1x1xf32>
      %20 = vector.broadcast %19 : vector<1x1xf32> to vector<4x1xf32>
      %21 = arith.subf %17, %20 : vector<4x1xf32>
      %22 = math.exp %21 : vector<4x1xf32>
      %cst_16 = arith.constant dense<0.000000e+00> : vector<1xf32>
      %23 = vector.multi_reduction <add>, %22, %cst_16 [0] : vector<4x1xf32> to vector<1xf32>
      %24 = vector.shape_cast %23 : vector<1xf32> to vector<1x1xf32>
      %25 = vector.broadcast %24 : vector<1x1xf32> to vector<4x1xf32>
      %26 = arith.divf %22, %25 : vector<4x1xf32>
      %c0_17 = arith.constant 0 : index
      %c0_18 = arith.constant 0 : index
      %c0_19 = arith.constant 0 : index
      %27 = vector.load %arg6[%c0_17, %c0_18, %c0_19] : memref<1x4x1xf32, #tpu.memory_space<vmem>>, vector<1x4x1xf32>
      %28 = vector.shape_cast %27 : vector<1x4x1xf32> to vector<4x1xf32>
      %29 = vector.shape_cast %26 : vector<4x1xf32> to vector<1x4x1xf32>
      tpu.vector_store %arg6[%c0_17, %c0_18, %c0_19], %29 {strides = array<i32>} : memref<1x4x1xf32, #tpu.memory_space<vmem>>, vector<1x4x1xf32>,
    } else {
    }
    return
  }
  func.func @transform_0(%arg0: i32, %arg1: i32) -> (i32, i32, i32) {
    %c0_i32 = arith.constant 0 : i32
    %c0_i32_0 = arith.constant 0 : i32
    return %arg0, %arg1, %c0_i32 : i32, i32, i32
  }
  func.func @transform_1(%arg0: i32, %arg1: i32) -> (i32, i32) {
    %c0_i32 = arith.constant 0 : i32
    %c0_i32_0 = arith.constant 0 : i32
    %c0_i32_1 = arith.constant 0 : i32
    return %c0_i32, %c0_i32_0 : i32, i32
  }
  func.func @transform_2(%arg0: i32, %arg1: i32) -> (i32, i32) {
    %c0_i32 = arith.constant 0 : i32
    %c0_i32_0 = arith.constant 0 : i32
    %c0_i32_1 = arith.constant 0 : i32
    return %c0_i32, %c0_i32_0 : i32, i32
  }
  func.func @transform_3(%arg0: i32, %arg1: i32) -> (i32, i32) {
    %c0_i32 = arith.constant 0 : i32
    %c0_i32_0 = arith.constant 0 : i32
    %c0_i32_1 = arith.constant 0 : i32
    return %c0_i32, %c0_i32_0 : i32, i32
  }
  func.func @transform_4(%arg0: i32, %arg1: i32) -> (i32, i32, i32) {
    %c0_i32 = arith.constant 0 : i32
    %c0_i32_0 = arith.constant 0 : i32
    %c0_i32_1 = arith.constant 0 : i32
    return %arg0, %c0_i32, %c0_i32_0 : i32, i32, i32
  }
}

</mosaic_0001>

<llo_original>
// kernel: tpu_custom_call.1
$region0: #{tpu_custom_call.1}
  #allocation0 [shape = 'u32[]', space=smem, size = 0x4, offset = 0x4, fixed_abs, tag = 'smem constant byte address 0x4 - core index']
  #allocation1 [shape = 'u32[144,128]{1,0:T(1,128)}', space=vmem, size = 0x12000, scoped, tag = 'internal scratch']
  #allocation2 [shape = 'f32[4,16]{1,0:T(4,128)}', space=vmem, size = 0x800, scoped, tag = 'scratch operand']
  %s0 = inlined_call_operand.vmem [shape: f32[2,4,256], index: 0, kind: input, shape index: {}]
  %s1 = inlined_call_operand.vmem [shape: f32[256,16], index: 1, kind: input, shape index: {}]
  %s2 = inlined_call_operand.vmem [shape: f32[1,16], index: 2, kind: input, shape index: {}]
  %s3 = inlined_call_operand.vmem [shape: f32[4,1], index: 3, kind: input, shape index: {}]
  %s4 = inlined_call_operand.vmem [shape: f32[2,4,1], index: 4, kind: output, shape index: {}]
  %s5 = sld [smem:[#allocation0]]
  $region53: #{tpu_custom_call.1} parent=0
    _
  %s7 = ssub.s32 1, %s5
  %s8 = scalar_select 0, %s7, %s5
  loop: start=0, step=1, limit=4
  $region2: #{tpu_custom_call.1} parent=0 // loop_pre_header
    _
  $region3: #{tpu_custom_call.1} parent=0 // loop_header
    %s10 = sphi 0, %s14
    %p11 = scmp.ge.s32.totalorder %s10, 4
    %s17 = sphi 0, %s29
    %s18 = sphi 0, %s25
    %s19 = sphi 0, %s17
    %s20 = sphi 0, %s18
    %s21 = sphi 0, %s19
    %s22 = sphi 0, %s20
    %s34 = sphi 0, %s36
    %s37 = sphi 0, %s34
    %s38 = sphi 0, %s37
    %s54 = sphi 0, %s38
    %s58 = sphi 0, %s58
    %s60 = sphi 0, %s58
    %s61 = sphi 0, %s60
    %s75 = sphi 0, %s61
    %s79 = sphi 0, %s79
    %s81 = sphi 0, %s79
    %s82 = sphi 0, %s81
    %s96 = sphi 0, %s82
    %s100 = sphi 0, %s100
    %s102 = sphi 0, %s100
    %s103 = sphi 0, %s102
    %s117 = sphi 0, %s103
    %s123 = sphi 0, %s125
    %s126 = sphi 0, %s123
    %s127 = sphi 0, %s126
    %s143 = sphi 0, %s127
  $region4: #{tpu_custom_call.1} parent=0 // loop_header_branch
    %13 = sbr.rel (%p11) target = $region8
  $region5: #{tpu_custom_call.1} parent=0 // loop_body
    %s15 = ssub.s32 %s10, 1
    %s16 = ssub.s32 %s10, 2
    %s23 = sadd.s32 1, %s18
    %p24 = scmp.ge.s32.totalorder %s23, 1
    %s25 = scalar_select %p24, 0, %s23
    %s26 = sadd.s32 1, %s17
    %s27 = scalar_select %p24, %s26, %s17
    %p28 = scmp.ge.s32.totalorder %s27, 2
    %s29 = scalar_select %p28, 0, %s27
    %s30 = ssub.s32 %s17, %s29
    %s31 = ssub.s32 %s18, %s25
    %s32 = sor.u32 %s30, %s31
    %p33 = scmp.eq.s32.totalorder %s32, 0
    %s35 = sadd.s32 %s34, 1
    %s36 = scalar_select %p33, %s34, %s35
    %p39 = pneg %p33
    %p40 = scmp.eq.s32.totalorder %s10, 1
    %p41 = por %p39, %p40
    %p42 = scmp.ne.s32.totalorder %s34, %s37
    %p43 = scmp.eq.s32.totalorder %s10, 0
    %p44 = por %p42, %p43
    %p45 = scmp.ne.s32.totalorder %s34, %s37
    %p46 = scmp.eq.s32.totalorder %s15, 1
    %p47 = por %p45, %p46
    %p48 = scmp.ne.s32.totalorder %s37, %s38
    %p49 = scmp.eq.s32.totalorder %s15, 0
    %p50 = por %p48, %p49
    %p51 = scmp.ne.s32.totalorder %s37, %s38
    %p52 = scmp.eq.s32.totalorder %s16, 1
    %p53 = por %p51, %p52
    %p55 = scmp.ne.s32.totalorder %s38, %s54
    %p56 = scmp.eq.s32.totalorder %s16, 0
    %p57 = por %p55, %p56
    %s59 = sadd.s32 %s58, 1
    %p62 = scmp.eq.s32.totalorder %s10, 1
    %p63 = scmp.ne.s32.totalorder %s58, %s60
    %p64 = scmp.eq.s32.totalorder %s10, 0
    %p65 = por %p63, %p64
    %p66 = scmp.ne.s32.totalorder %s58, %s60
    %p67 = scmp.eq.s32.totalorder %s15, 1
    %p68 = por %p66, %p67
    %p69 = scmp.ne.s32.totalorder %s60, %s61
    %p70 = scmp.eq.s32.totalorder %s15, 0
    %p71 = por %p69, %p70
    %p72 = scmp.ne.s32.totalorder %s60, %s61
    %p73 = scmp.eq.s32.totalorder %s16, 1
    %p74 = por %p72, %p73
    %p76 = scmp.ne.s32.totalorder %s61, %s75
    %p77 = scmp.eq.s32.totalorder %s16, 0
    %p78 = por %p76, %p77
    %s80 = sadd.s32 %s79, 1
    %p83 = scmp.eq.s32.totalorder %s10, 1
    %p84 = scmp.ne.s32.totalorder %s79, %s81
    %p85 = scmp.eq.s32.totalorder %s10, 0
    %p86 = por %p84, %p85
    %p87 = scmp.ne.s32.totalorder %s79, %s81
    %p88 = scmp.eq.s32.totalorder %s15, 1
    %p89 = por %p87, %p88
    %p90 = scmp.ne.s32.totalorder %s81, %s82
    %p91 = scmp.eq.s32.totalorder %s15, 0
    %p92 = por %p90, %p91
    %p93 = scmp.ne.s32.totalorder %s81, %s82
    %p94 = scmp.eq.s32.totalorder %s16, 1
    %p95 = por %p93, %p94
    %p97 = scmp.ne.s32.totalorder %s82, %s96
    %p98 = scmp.eq.s32.totalorder %s16, 0
    %p99 = por %p97, %p98
    %s101 = sadd.s32 %s100, 1
    %p104 = scmp.eq.s32.totalorder %s10, 1
    %p105 = scmp.ne.s32.totalorder %s100, %s102
    %p106 = scmp.eq.s32.totalorder %s10, 0
    %p107 = por %p105, %p106
    %p108 = scmp.ne.s32.totalorder %s100, %s102
    %p109 = scmp.eq.s32.totalorder %s15, 1
    %p110 = por %p108, %p109
    %p111 = scmp.ne.s32.totalorder %s102, %s103
    %p112 = scmp.eq.s32.totalorder %s15, 0
    %p113 = por %p111, %p112
    %p114 = scmp.ne.s32.totalorder %s102, %s103
    %p115 = scmp.eq.s32.totalorder %s16, 1
    %p116 = por %p114, %p115
    %p118 = scmp.ne.s32.totalorder %s103, %s117
    %p119 = scmp.eq.s32.totalorder %s16, 0
    %p120 = por %p118, %p119
    %s121 = ssub.s32 %s17, %s29
    %p122 = scmp.eq.s32.totalorder %s121, 0
    %s124 = sadd.s32 %s123, 1
    %s125 = scalar_select %p122, %s123, %s124
    %p128 = pneg %p122
    %p129 = scmp.eq.s32.totalorder %s10, 1
    %p130 = por %p128, %p129
    %p131 = scmp.ne.s32.totalorder %s123, %s126
    %p132 = scmp.eq.s32.totalorder %s10, 0
    %p133 = por %p131, %p132
    %p134 = scmp.ne.s32.totalorder %s123, %s126
    %p135 = scmp.eq.s32.totalorder %s15, 1
    %p136 = por %p134, %p135
    %p137 = scmp.ne.s32.totalorder %s126, %s127
    %p138 = scmp.eq.s32.totalorder %s15, 0
    %p139 = por %p137, %p138
    %p140 = scmp.ne.s32.totalorder %s126, %s127
    %p141 = scmp.eq.s32.totalorder %s16, 1
    %p142 = por %p140, %p141
    %p144 = scmp.ne.s32.totalorder %s127, %s143
    %p145 = scmp.eq.s32.totalorder %s16, 0
    %p146 = por %p144, %p145
    %p147 = scmp.le.s32.totalorder 1, %s10
    %p148 = scmp.lt.s32.totalorder %s10, 3
    %p149 = pnand %p147, %p148
    %p150 = pneg %p149
    // Predicated region
    $region9: #{tpu_custom_call.1} parent=5 // pred_check
      _
    $region10: #{tpu_custom_call.1} parent=5 // pred_check_branch
      %152 = sbr.rel (%p149) target = $region12
    $region11: #{tpu_custom_call.1} parent=5 // pred_region
      %s153 = ssub.s32 %s10, 1
      // Predicated region
      $region13: #{tpu_custom_call.1} parent=11 // pred_check
        %p154 = pneg %p71
      $region14: #{tpu_custom_call.1} parent=11 // pred_check_branch
        %156 = sbr.rel (%p154) target = $region16
      $region15: #{tpu_custom_call.1} parent=11 // pred_region
        _
      $region16: #{tpu_custom_call.1} parent=11 // pred_fallthru
        _
      // Predicated region
      $region17: #{tpu_custom_call.1} parent=11 // pred_check
        %p157 = pneg %p92
      $region18: #{tpu_custom_call.1} parent=11 // pred_check_branch
        %159 = sbr.rel (%p157) target = $region20
      $region19: #{tpu_custom_call.1} parent=11 // pred_region
        _
      $region20: #{tpu_custom_call.1} parent=11 // pred_fallthru
        _
      // Predicated region
      $region21: #{tpu_custom_call.1} parent=11 // pred_check
        %p160 = pneg %p113
      $region22: #{tpu_custom_call.1} parent=11 // pred_check_branch
        %162 = sbr.rel (%p160) target = $region24
      $region23: #{tpu_custom_call.1} parent=11 // pred_region
        _
      $region24: #{tpu_custom_call.1} parent=11 // pred_fallthru
        _
    $region12: #{tpu_custom_call.1} parent=5 // pred_fallthru
      _
    %p163 = scmp.lt.s32.totalorder %s10, 2
    // Predicated region
    $region25: #{tpu_custom_call.1} parent=5 // pred_check
      %p164 = pneg %p163
    $region26: #{tpu_custom_call.1} parent=5 // pred_check_branch
      %166 = sbr.rel (%p164) target = $region28
    $region27: #{tpu_custom_call.1} parent=5 // pred_region
      // Predicated region
      $region29: #{tpu_custom_call.1} parent=27 // pred_check
        %p167 = pneg %p44
      $region30: #{tpu_custom_call.1} parent=27 // pred_check_branch
        %169 = sbr.rel (%p167) target = $region32
      $region31: #{tpu_custom_call.1} parent=27 // pred_region
        %p170 = scmp.lt.s32.totalorder %s17, 1
        %s171 = scalar_select %p170, %s17, 1
        %p172 = scmp.lt.s32.totalorder %s18, 0
        %s173 = scalar_select %p172, %s18, 0
        %s174 = smul.addr %s173, 2
        %s175 = smul.addr %s171, 2
        %s176 = sadd.s32 %s174, %s175
        %s177 = smul.addr %s176, 4
        %s178 = scalar_lea.vmem %s0, %s177
      $region32: #{tpu_custom_call.1} parent=27 // pred_fallthru
        _
    $region28: #{tpu_custom_call.1} parent=5 // pred_fallthru
      _
    %p179 = scmp.le.s32.totalorder 1, %s10
    %p180 = scmp.lt.s32.totalorder %s10, 3
    %p181 = pnand %p179, %p180
    %p182 = pneg %p181
    // Predicated region
    $region33: #{tpu_custom_call.1} parent=5 // pred_check
      _
    $region34: #{tpu_custom_call.1} parent=5 // pred_check_branch
      %184 = sbr.rel (%p181) target = $region36
    $region35: #{tpu_custom_call.1} parent=5 // pred_region
      %s185 = ssub.s32 %s10, 1
      %p186 = scmp.lt.s32.totalorder %s19, 1
      %s187 = scalar_select %p186, %s19, 1
      %p188 = scmp.lt.s32.totalorder %s20, 0
      %s189 = scalar_select %p188, %s20, 0
      %s190 = smul.addr %s189, 2
      %s191 = smul.addr %s187, 2
      %s192 = sadd.s32 %s190, %s191
      %s193 = smul.addr %s192, 4
      %s194 = scalar_lea.vmem %s0, %s193
      %p195 = pneg %p50
      %p196 = pneg %p47
      %p197 = pneg %p71
      %p198 = pneg %p68
      %p199 = pneg %p92
      %p200 = pneg %p89
      %p201 = pneg %p113
      %p202 = pneg %p110
      %p203 = pneg %p139
      %p204 = pneg %p136
      %p205 = scmp.lt.s32.totalorder %s19, 1
      %s206 = scalar_select %p205, %s19, 1
      %s207 = smul.addr %s206, 4
      %s208 = scalar_lea.vmem %s4, %s207
      %p209 = scmp.lt.s32.totalorder %s19, 1
      %s210 = scalar_select %p209, %s19, 1
      %p211 = scmp.lt.s32.totalorder %s20, 0
      %s212 = scalar_select %p211, %s20, 0
      %s213 = smul.addr %s212, 2
      %s214 = smul.addr %s210, 2
      %s215 = sadd.s32 %s213, %s214
      %s216 = smul.addr %s215, 4
      %s217 = scalar_lea.vmem %s0, %s216
      %p218 = scmp.lt.s32.totalorder %s19, 1
      %s219 = scalar_select %p218, %s19, 1
      %s220 = smul.addr %s219, 4
      %s221 = scalar_lea.vmem %s4, %s220
      %v222 = vld [vmem:[%s217] sm:$0xff]
      %v223 = vld [vmem:[%s1] sm:$0xff]
      %v224 = vld [vmem:[%s1 + $0x8] sm:$0xff]
      %v225 = vld [vmem:[%s1 + $0x10] sm:$0xff]
      %v226 = vld [vmem:[%s1 + $0x18] sm:$0xff]
      %v227 = vld [vmem:[%s1 + $0x20] sm:$0xff]
      %v228 = vld [vmem:[%s1 + $0x28] sm:$0xff]
      %v229 = vld [vmem:[%s1 + $0x30] sm:$0xff]
      %v230 = vld [vmem:[%s1 + $0x38] sm:$0xff]
      %v231 = vld [vmem:[%s1 + $0x40] sm:$0xff]
      %v232 = vld [vmem:[%s1 + $0x48] sm:$0xff]
      %v233 = vld [vmem:[%s1 + $0x50] sm:$0xff]
      %v234 = vld [vmem:[%s1 + $0x58] sm:$0xff]
      %v235 = vld [vmem:[%s1 + $0x60] sm:$0xff]
      %v236 = vld [vmem:[%s1 + $0x68] sm:$0xff]
      %v237 = vld [vmem:[%s1 + $0x70] sm:$0xff]
      %v238 = vld [vmem:[%s1 + $0x78] sm:$0xff]
      %v239 = vld [vmem:[%s1 + $0x80] sm:$0xff]
      %v240 = vld [vmem:[%s1 + $0x88] sm:$0xff]
      %v241 = vld [vmem:[%s1 + $0x90] sm:$0xff]
      %v242 = vld [vmem:[%s1 + $0x98] sm:$0xff]
      %v243 = vld [vmem:[%s1 + $0xa0] sm:$0xff]
      %v244 = vld [vmem:[%s1 + $0xa8] sm:$0xff]
      %v245 = vld [vmem:[%s1 + $0xb0] sm:$0xff]
      %v246 = vld [vmem:[%s1 + $0xb8] sm:$0xff]
      %v247 = vld [vmem:[%s1 + $0xc0] sm:$0xff]
      %v248 = vld [vmem:[%s1 + $0xc8] sm:$0xff]
      %v249 = vld [vmem:[%s1 + $0xd0] sm:$0xff]
      %v250 = vld [vmem:[%s1 + $0xd8] sm:$0xff]
      %v251 = vld [vmem:[%s1 + $0xe0] sm:$0xff]
      %v252 = vld [vmem:[%s1 + $0xe8] sm:$0xff]
      %v253 = vld [vmem:[%s1 + $0xf0] sm:$0xff]
      %v254 = vld [vmem:[%s1 + $0xf8] sm:$0xff]
      %v256 = vcombine.high %v222, %v222
      %258 = vmatprep.subr.mxu0 0.0
      %259 = vmatpush1.msra.mxu0 %v238
      %260 = vmatprep.subr.mxu0 0.0
      %261 = vmatpush1.msra.mxu0 %v237
      %262 = vmatprep.subr.mxu0 0.0
      %263 = vmatpush1.msra.mxu0 %v236
      %264 = vmatprep.subr.mxu0 0.0
      %265 = vmatpush1.msra.mxu0 %v235
      %266 = vmatprep.subr.mxu0 0.0
      %267 = vmatpush1.msra.mxu0 %v234
      %268 = vmatprep.subr.mxu0 0.0
      %269 = vmatpush1.msra.mxu0 %v233
      %270 = vmatprep.subr.mxu0 0.0
      %271 = vmatpush1.msra.mxu0 %v232
      %272 = vmatprep.subr.mxu0 0.0
      %273 = vmatpush1.msra.mxu0 %v231
      %274 = vmatprep.subr.mxu0 0.0
      %275 = vmatpush1.msra.mxu0 %v230
      %276 = vmatprep.subr.mxu0 0.0
      %277 = vmatpush1.msra.mxu0 %v229
      %278 = vmatprep.subr.mxu0 0.0
      %279 = vmatpush1.msra.mxu0 %v228
      %280 = vmatprep.subr.mxu0 0.0
      %281 = vmatpush1.msra.mxu0 %v227
      %282 = vmatprep.subr.mxu0 0.0
      %283 = vmatpush1.msra.mxu0 %v226
      %284 = vmatprep.subr.mxu0 0.0
      %285 = vmatpush1.msra.mxu0 %v225
      %286 = vmatprep.subr.mxu0 0.0
      %287 = vmatpush1.msra.mxu0 %v224
      %288 = vmatprep.subr.mxu0 0.0
      %289 = vmatpush1.msra.mxu0 %v223
      %290 = vmatprep.subr.mxu0 0.0
      %291 = vmatpush2.msra.mxu0 %v254
      %292 = vmatprep.subr.mxu0 0.0
      %293 = vmatpush2.msra.mxu0 %v253
      %294 = vmatprep.subr.mxu0 0.0
      %295 = vmatpush2.msra.mxu0 %v252
      %296 = vmatprep.subr.mxu0 0.0
      %297 = vmatpush2.msra.mxu0 %v251
      %298 = vmatprep.subr.mxu0 0.0
      %299 = vmatpush2.msra.mxu0 %v250
      %300 = vmatprep.subr.mxu0 0.0
      %301 = vmatpush2.msra.mxu0 %v249
      %302 = vmatprep.subr.mxu0 0.0
      %303 = vmatpush2.msra.mxu0 %v248
      %304 = vmatprep.subr.mxu0 0.0
      %305 = vmatpush2.msra.mxu0 %v247
      %306 = vmatprep.subr.mxu0 0.0
      %307 = vmatpush2.msra.mxu0 %v246
      %308 = vmatprep.subr.mxu0 0.0
      %309 = vmatpush2.msra.mxu0 %v245
      %310 = vmatprep.subr.mxu0 0.0
      %311 = vmatpush2.msra.mxu0 %v244
      %312 = vmatprep.subr.mxu0 0.0
      %313 = vmatpush2.msra.mxu0 %v243
      %314 = vmatprep.subr.mxu0 0.0
      %315 = vmatpush2.msra.mxu0 %v242
      %316 = vmatprep.subr.mxu0 0.0
      %317 = vmatpush2.msra.mxu0 %v241
      %318 = vmatprep.subr.mxu0 0.0
      %319 = vmatpush2.msra.mxu0 %v240
      %320 = vmatprep.subr.mxu0 0.0
      %321 = vmatpush2.msra.mxu0 %v239
      %322 = vmatprep.mubr.f32.mxu0 %v256
      %323 = vmatmul.mubr.f32.gmra.mxu0 %v222
      %v324 = vpop.f32.mrf.mxu0
      %v325 = vadd.f32 0.0, %v324
      %v326 = vpop.f32.mrf.mxu0
      %327 = vdwg.mxu0
      %v328 = vmax.f32 %v325, 0.0
      %vm329 = vcmask 125952
      %330 = vst.msk [vmem:[#allocation2] sm:$0xf] %vm329, %v328
      %p331 = scmp.eq.s32.totalorder %s20, 0
      // Predicated region
      $region37: #{tpu_custom_call.1} parent=35 // pred_check
        %p332 = pneg %p331
      $region38: #{tpu_custom_call.1} parent=35 // pred_check_branch
        %334 = sbr.rel (%p332) target = $region40
      $region39: #{tpu_custom_call.1} parent=35 // pred_region
        %v335 = vld [vmem:[#allocation2] sm:$0xf]
        %v336 = vld [vmem:[%s2] sm:$0x1]
        %v338 = vlaneseq
        %v339 = vshrl.u32 %v338, 7
        %v340 = vsub.s32 0, %v339
        %v341 = vrot.slane %v336, %v340
        %v343 = vmul.f32 %v335, %v341
        %v344 = vsel %vm329, %v343, 0.0
        %345 = vadd.xlane.f32.xlu0 %v344
        %v346 = vpop.xlane.xlu0 %345
        %v347 = vld [vmem:[%s3] sm:$0xf]
        %v348 = vadd.f32 %v346, %v347
        %vm349 = vcmask 3072
        %v350 = vsel %vm349, %v348, -inf
        %v351 = vrot.slane %v350, 4
        %v352 = vmax.f32 %v350, %v351
        %v353 = vrot.slane %v352, 2
        %v354 = vmax.f32 %v352, %v353
        %v355 = vrot.slane %v354, 1
        %v356 = vmax.f32 %v354, %v355
        %v357 = vsub.f32 %v348, %v356
        %v358 = vmul.f32 %v357, 1.442695
        %v359 = vpow.pop %v358
        %v360 = vsel %vm349, %v359, 0.0
        %v361 = vrot.slane %v360, 4
        %v362 = vadd.f32 %v360, %v361
        %v363 = vrot.slane %v362, 2
        %v364 = vadd.f32 %v362, %v363
        %v365 = vrot.slane %v364, 1
        %v366 = vadd.f32 %v364, %v365
        %v367 = vrcp.pop %v366
        %v368 = vmul.f32 %v359, %v367
        %369 = vst.msk [vmem:[%s221] sm:$0xf] %vm349, %v368
      $region40: #{tpu_custom_call.1} parent=35 // pred_fallthru
        _
      %p370 = scmp.lt.s32.totalorder %s19, 1
      %s371 = scalar_select %p370, %s19, 1
      %s372 = smul.addr %s371, 4
      %s373 = scalar_lea.vmem %s4, %s372
      // Predicated region
      $region41: #{tpu_custom_call.1} parent=35 // pred_check
        %p374 = pneg %p136
      $region42: #{tpu_custom_call.1} parent=35 // pred_check_branch
        %376 = sbr.rel (%p374) target = $region44
      $region43: #{tpu_custom_call.1} parent=35 // pred_region
        _
      $region44: #{tpu_custom_call.1} parent=35 // pred_fallthru
        _
    $region36: #{tpu_custom_call.1} parent=5 // pred_fallthru
      _
    %p377 = scmp.le.s32.totalorder 2, %s10
    // Predicated region
    $region45: #{tpu_custom_call.1} parent=5 // pred_check
      %p378 = pneg %p377
    $region46: #{tpu_custom_call.1} parent=5 // pred_check_branch
      %380 = sbr.rel (%p378) target = $region48
    $region47: #{tpu_custom_call.1} parent=5 // pred_region
      %s381 = ssub.s32 %s10, 2
      // Predicated region
      $region49: #{tpu_custom_call.1} parent=47 // pred_check
        %p382 = pneg %p142
      $region50: #{tpu_custom_call.1} parent=47 // pred_check_branch
        %384 = sbr.rel (%p382) target = $region52
      $region51: #{tpu_custom_call.1} parent=47 // pred_region
        %p385 = scmp.lt.s32.totalorder %s21, 1
        %s386 = scalar_select %p385, %s21, 1
        %s387 = smul.addr %s386, 4
        %s388 = scalar_lea.vmem %s4, %s387
      $region52: #{tpu_custom_call.1} parent=47 // pred_fallthru
        _
    $region48: #{tpu_custom_call.1} parent=5 // pred_fallthru
      _
  $region6: #{tpu_custom_call.1} parent=0 // loop_footer
    %s14 = sadd.s32 1, %s10
  $region7: #{tpu_custom_call.1} parent=0 // loop_footer_branch
    %9 = sbr.rel target = $region3
  $region8: #{tpu_custom_call.1} parent=0 // loop_exit
    _

</llo_original>
